<compile_context>
chip_gen: v5e
topology: v5e:2x2
jax: 0.10.0
libtpu: 0.0.40
codegen_flags: <defaults>
</compile_context>

<pallas_src>
import functools

import jax
import jax.numpy as jnp
from jax.experimental import pallas as pl
from jax.experimental.pallas import tpu as pltpu

INPUT_SIZE = 360
HS1, HS2, HS3, HS4 = 128, 64, 64, 32
HP = 128                         # hidden dims lane-padded to 128 (zero padding, math unchanged)
NEG_SLOPE = 0.01                 # nn.LeakyReLU() default


def _round_up(x, m):
    return ((x + m - 1) // m) * m


def _device_kind():
    try:
        return jax.devices()[0].device_kind.lower()
    except Exception:
        return ""


_KIND = _device_kind()
# 2 TensorCores per device: v4 / v5p megacore and v7x. v5e / v6e are single-TC.
_NUM_TC = 2 if any(t in _KIND for t in ("v4", "v5p", "v7")) else 1
# bf16 VALUs exist on v6e / v7x; v5e (and unknown) keep the f32 epilogue.
_BF16_EPILOGUE = any(t in _KIND for t in ("v6", "v7"))
# Conservative tile cap so double-buffered x + f32 intermediates + the
# lane-padded output buffers fit the scoped-VMEM default (16 MiB on v5e,
# 32 MiB on v6e / v7x) without a vmem_limit_bytes override.
_TILE_CAP = 4096 if any(t in _KIND for t in ("v6", "v7")) else 2048


def _leaky_relu(x):
    # max-form: 2 VALU ops (mul + max) instead of cmp + mul + select.
    return jnp.maximum(x, NEG_SLOPE * x)


def ann_kernel(x_ref,
               w1_ref, b1_ref,
               w2_ref, b2_ref,
               w3_ref, b3_ref,
               w4_ref, b4_ref,
               w5_ref, b5_ref,
               o_ref, *, epi_dtype):
    # x streams from HBM in its original dtype and is cast to bf16 in-kernel —
    # no separate wrapper-side pad/cast pass over the batch.
    h = x_ref[...].astype(jnp.bfloat16)

    def layer(h, w_ref, b_ref):
        acc = jnp.dot(h, w_ref[...], preferred_element_type=jnp.float32)
        acc = acc.astype(epi_dtype) + b_ref[...].astype(epi_dtype)
        return _leaky_relu(acc)

    # Layers 1-3: bf16 MXU matmuls with f32 accumulation; epilogue in epi_dtype.
    h = layer(h, w1_ref, b1_ref).astype(jnp.bfloat16)
    h = layer(h, w2_ref, b2_ref).astype(jnp.bfloat16)
    h = layer(h, w3_ref, b3_ref).astype(jnp.bfloat16)

    # Layer 4: keep the epilogue in f32 (it feeds the final reduction).
    acc4 = jnp.dot(h, w4_ref[...], preferred_element_type=jnp.float32) + b4_ref[...]
    h4 = _leaky_relu(acc4)

    # Layer 5 (out_features == 1): VPU multiply + lane reduction instead of an
    # N=1 MXU matmul. Padded tail of w5 is zero, so the sum is exact.
    out = jnp.sum(h4 * w5_ref[...], axis=-1, keepdims=True) + b5_ref[...]
    o_ref[...] = out.astype(o_ref.dtype)


def prepare_params(params):
    """Pad hidden dims to 128 lanes (zero padding keeps the math exact) and
    cast matmul weights to bf16 once. The 360-wide input dim is NOT padded:
    x streams unpadded and the MXU handles K=360 directly."""
    (w1, b1), (w2, b2), (w3, b3), (w4, b4), (w5, b5) = (
        params["fc1"], params["fc2"], params["fc3"], params["fc4"], params["fc5"])

    def pad2(a, rows, cols):
        r, c = a.shape
        return jnp.pad(a, ((0, rows - r), (0, cols - c)))

    return (
        pad2(w1, INPUT_SIZE, HP).astype(jnp.bfloat16), pad2(b1, 1, HP).astype(jnp.float32),
        pad2(w2, HP, HP).astype(jnp.bfloat16),         pad2(b2, 1, HP).astype(jnp.float32),
        pad2(w3, HP, HP).astype(jnp.bfloat16),         pad2(b3, 1, HP).astype(jnp.float32),
        pad2(w4, HP, HP).astype(jnp.bfloat16),         pad2(b4, 1, HP).astype(jnp.float32),
        pad2(w5.T, 1, HP).astype(jnp.float32),         # fc5 weight as a (1, 128) row
        b5.astype(jnp.float32).reshape(1, 1),
    )


@functools.partial(jax.jit, static_argnames=("tile_b",))
def ann_forward(x, prepared, *, tile_b=2048):
    """x: (B, 360) float32 (or bfloat16). Returns (B, 1) float32."""
    B, D = x.shape
    assert D == INPUT_SIZE

    # Batch tile: multiple of 16 (bf16 sublane packing), capped by the per-chip
    # VMEM budget and by the (rounded-up) batch. Any B works: the last grid
    # step is a ragged boundary block whose extra rows are computed and dropped.
    tile = min(_round_up(tile_b, 16), _round_up(B, 16), _TILE_CAP)
    if _NUM_TC > 1 and B > 512:
        # Only split for multi-TensorCore chips; on 1-TC chips a split is pure overhead.
        tile = min(tile, _round_up(pl.cdiv(B, _NUM_TC), 16))
    n_tiles = pl.cdiv(B, tile)

    (w1, b1, w2, b2, w3, b3, w4, b4, w5, b5) = prepared

    def const(shape):
        # Constant index_map: stays VMEM-resident across all grid steps.
        return pl.BlockSpec(shape, lambda i: (0, 0))

    kernel = functools.partial(
        ann_kernel,
        epi_dtype=jnp.bfloat16 if _BF16_EPILOGUE else jnp.float32)

    out = pl.pallas_call(
        kernel,
        out_shape=jax.ShapeDtypeStruct((B, 1), jnp.float32),
        grid_spec=pltpu.PrefetchScalarGridSpec(
            num_scalar_prefetch=0,
            grid=(n_tiles,),
            in_specs=[
                pl.BlockSpec((tile, INPUT_SIZE), lambda i: (i, 0)),  # the only streamed DMA
                const(w1.shape), const(b1.shape),
                const(w2.shape), const(b2.shape),
                const(w3.shape), const(b3.shape),
                const(w4.shape), const(b4.shape),
                const(w5.shape), const(b5.shape),
            ],
            out_specs=pl.BlockSpec((tile, 1), lambda i: (i, 0)),
        ),
        compiler_params=pltpu.CompilerParams(
            dimension_semantics=("parallel",),
        ),
    )(x, w1, b1, w2, b2, w3, b3, w4, b4, w5, b5)

    return out


def init_params(key):
    """Deterministic init mimicking nn.Linear's U(-1/sqrt(fan_in), 1/sqrt(fan_in))."""
    sizes = [(INPUT_SIZE, HS1), (HS1, HS2), (HS2, HS3), (HS3, HS4), (HS4, 1)]
    names = ["fc1", "fc2", "fc3", "fc4", "fc5"]
    params = {}
    for name, (fan_in, fan_out) in zip(names, sizes):
        key, kw, kb = jax.random.split(key, 3)
        bound = 1.0 / jnp.sqrt(fan_in)
        # Stored transposed vs PyTorch: (in, out) so the kernel does x @ W.
        w = jax.random.uniform(kw, (fan_in, fan_out), jnp.float32, -bound, bound)
        b = jax.random.uniform(kb, (1, fan_out), jnp.float32, -bound, bound)
        params[name] = (w, b)
    return params


def ann_reference(x, params):
    h = x
    for name in ("fc1", "fc2", "fc3", "fc4"):
        w, b = params[name]
        z = jnp.dot(h, w, preferred_element_type=jnp.float32) + b
        h = jnp.where(z > 0, z, NEG_SLOPE * z)
    w, b = params["fc5"]
    return jnp.dot(h, w, preferred_element_type=jnp.float32) + b


if __name__ == "__main__":
    key = jax.random.PRNGKey(0)
    key, kx = jax.random.split(key)
    B = 16                                   # small test batch; kernel handles any B
    x = jax.random.normal(kx, (B, INPUT_SIZE), jnp.float32)
    params = init_params(key)

    prepared = prepare_params(params)
    out = jax.block_until_ready(ann_forward(x, prepared))

    ref = ann_reference(x, params)
    assert out.shape == (B, 1)
    # bf16 matmul operands (f32 accumulation) -> loosened tolerance vs f32 reference.
    err = jnp.max(jnp.abs(out - ref))
    assert jnp.allclose(out, ref, atol=5e-2, rtol=5e-2), f"mismatch, max err {err}"
    print("KERNEL_OK")
</pallas_src>

<mosaic_0001>
module attributes {stable_mosaic.version = 11 : i64} {
  func.func @ann_kernel(%arg0: i32, %arg1: memref<16x360xf32, #tpu.memory_space<vmem>>, %arg2: memref<360x128xbf16, #tpu.memory_space<vmem>>, %arg3: memref<1x128xf32, #tpu.memory_space<vmem>>, %arg4: memref<128x128xbf16, #tpu.memory_space<vmem>>, %arg5: memref<1x128xf32, #tpu.memory_space<vmem>>, %arg6: memref<128x128xbf16, #tpu.memory_space<vmem>>, %arg7: memref<1x128xf32, #tpu.memory_space<vmem>>, %arg8: memref<128x128xbf16, #tpu.memory_space<vmem>>, %arg9: memref<1x128xf32, #tpu.memory_space<vmem>>, %arg10: memref<1x128xf32, #tpu.memory_space<vmem>>, %arg11: memref<1x1xf32, #tpu.memory_space<vmem>>, %arg12: memref<16x1xf32, #tpu.memory_space<vmem>>) attributes {dimension_semantics = [#tpu.dimension_semantics<parallel>], iteration_bounds = array<i64: 1>, scalar_prefetch = 0 : i64, scratch_operands = 0 : i64, tpu.core_type = #tpu.core_type<tc>, window_params = [{transform_indices = @transform_0, window_bounds = array<i64: 16, 360>}, {pipeline_mode = #tpu.pipeline_mode<synchronous>, transform_indices = @transform_1, window_bounds = array<i64: 360, 128>}, {pipeline_mode = #tpu.pipeline_mode<synchronous>, transform_indices = @transform_2, window_bounds = array<i64: 1, 128>}, {pipeline_mode = #tpu.pipeline_mode<synchronous>, transform_indices = @transform_3, window_bounds = array<i64: 128, 128>}, {pipeline_mode = #tpu.pipeline_mode<synchronous>, transform_indices = @transform_4, window_bounds = array<i64: 1, 128>}, {pipeline_mode = #tpu.pipeline_mode<synchronous>, transform_indices = @transform_5, window_bounds = array<i64: 128, 128>}, {pipeline_mode = #tpu.pipeline_mode<synchronous>, transform_indices = @transform_6, window_bounds = array<i64: 1, 128>}, {pipeline_mode = #tpu.pipeline_mode<synchronous>, transform_indices = @transform_7, window_bounds = array<i64: 128, 128>}, {pipeline_mode = #tpu.pipeline_mode<synchronous>, transform_indices = @transform_8, window_bounds = array<i64: 1, 128>}, {pipeline_mode = #tpu.pipeline_mode<synchronous>, transform_indices = @transform_9, window_bounds = array<i64: 1, 128>}, {pipeline_mode = #tpu.pipeline_mode<synchronous>, transform_indices = @transform_10, window_bounds = array<i64: 1, 1>}, {transform_indices = @transform_11, window_bounds = array<i64: 16, 1>}]} {
    %c0 = arith.constant 0 : index
    %c0_0 = arith.constant 0 : index
    %0 = vector.load %arg1[%c0, %c0_0] : memref<16x360xf32, #tpu.memory_space<vmem>>, vector<16x360xf32>
    %1 = arith.truncf %0 : vector<16x360xf32> to vector<16x360xbf16>
    %c0_1 = arith.constant 0 : index
    %c0_2 = arith.constant 0 : index
    %2 = vector.load %arg2[%c0_1, %c0_2] : memref<360x128xbf16, #tpu.memory_space<vmem>>, vector<360x128xbf16>
    %cst = arith.constant dense<0.000000e+00> : vector<16x128xf32>
    %3 = tpu.matmul %1, %2, %cst {dimension_numbers = #tpu.dot_dimension_numbers<[1], [0], [0], [1], [0, 0, 1, 1], [], []>} : vector<16x360xbf16>, vector<360x128xbf16>, vector<16x128xf32> -> vector<16x128xf32>
    %c0_3 = arith.constant 0 : index
    %c0_4 = arith.constant 0 : index
    %4 = vector.load %arg3[%c0_3, %c0_4] : memref<1x128xf32, #tpu.memory_space<vmem>>, vector<1x128xf32>
    %5 = vector.broadcast %4 : vector<1x128xf32> to vector<16x128xf32>
    %6 = arith.addf %3, %5 : vector<16x128xf32>
    %cst_5 = arith.constant 0.00999999977 : f32
    %7 = vector.broadcast %cst_5 : f32 to vector<16x128xf32>
    %8 = arith.mulf %7, %6 : vector<16x128xf32>
    %9 = arith.maximumf %6, %8 : vector<16x128xf32>
    %10 = arith.truncf %9 : vector<16x128xf32> to vector<16x128xbf16>
    %c0_6 = arith.constant 0 : index
    %c0_7 = arith.constant 0 : index
    %11 = vector.load %arg4[%c0_6, %c0_7] : memref<128x128xbf16, #tpu.memory_space<vmem>>, vector<128x128xbf16>
    %cst_8 = arith.constant dense<0.000000e+00> : vector<16x128xf32>
    %12 = tpu.matmul %10, %11, %cst_8 {dimension_numbers = #tpu.dot_dimension_numbers<[1], [0], [0], [1], [0, 0, 1, 1], [], []>} : vector<16x128xbf16>, vector<128x128xbf16>, vector<16x128xf32> -> vector<16x128xf32>
    %c0_9 = arith.constant 0 : index
    %c0_10 = arith.constant 0 : index
    %13 = vector.load %arg5[%c0_9, %c0_10] : memref<1x128xf32, #tpu.memory_space<vmem>>, vector<1x128xf32>
    %14 = vector.broadcast %13 : vector<1x128xf32> to vector<16x128xf32>
    %15 = arith.addf %12, %14 : vector<16x128xf32>
    %cst_11 = arith.constant 0.00999999977 : f32
    %16 = vector.broadcast %cst_11 : f32 to vector<16x128xf32>
    %17 = arith.mulf %16, %15 : vector<16x128xf32>
    %18 = arith.maximumf %15, %17 : vector<16x128xf32>
    %19 = arith.truncf %18 : vector<16x128xf32> to vector<16x128xbf16>
    %c0_12 = arith.constant 0 : index
    %c0_13 = arith.constant 0 : index
    %20 = vector.load %arg6[%c0_12, %c0_13] : memref<128x128xbf16, #tpu.memory_space<vmem>>, vector<128x128xbf16>
    %cst_14 = arith.constant dense<0.000000e+00> : vector<16x128xf32>
    %21 = tpu.matmul %19, %20, %cst_14 {dimension_numbers = #tpu.dot_dimension_numbers<[1], [0], [0], [1], [0, 0, 1, 1], [], []>} : vector<16x128xbf16>, vector<128x128xbf16>, vector<16x128xf32> -> vector<16x128xf32>
    %c0_15 = arith.constant 0 : index
    %c0_16 = arith.constant 0 : index
    %22 = vector.load %arg7[%c0_15, %c0_16] : memref<1x128xf32, #tpu.memory_space<vmem>>, vector<1x128xf32>
    %23 = vector.broadcast %22 : vector<1x128xf32> to vector<16x128xf32>
    %24 = arith.addf %21, %23 : vector<16x128xf32>
    %cst_17 = arith.constant 0.00999999977 : f32
    %25 = vector.broadcast %cst_17 : f32 to vector<16x128xf32>
    %26 = arith.mulf %25, %24 : vector<16x128xf32>
    %27 = arith.maximumf %24, %26 : vector<16x128xf32>
    %28 = arith.truncf %27 : vector<16x128xf32> to vector<16x128xbf16>
    %c0_18 = arith.constant 0 : index
    %c0_19 = arith.constant 0 : index
    %29 = vector.load %arg8[%c0_18, %c0_19] : memref<128x128xbf16, #tpu.memory_space<vmem>>, vector<128x128xbf16>
    %cst_20 = arith.constant dense<0.000000e+00> : vector<16x128xf32>
    %30 = tpu.matmul %28, %29, %cst_20 {dimension_numbers = #tpu.dot_dimension_numbers<[1], [0], [0], [1], [0, 0, 1, 1], [], []>} : vector<16x128xbf16>, vector<128x128xbf16>, vector<16x128xf32> -> vector<16x128xf32>
    %c0_21 = arith.constant 0 : index
    %c0_22 = arith.constant 0 : index
    %31 = vector.load %arg9[%c0_21, %c0_22] : memref<1x128xf32, #tpu.memory_space<vmem>>, vector<1x128xf32>
    %32 = vector.broadcast %31 : vector<1x128xf32> to vector<16x128xf32>
    %33 = arith.addf %30, %32 : vector<16x128xf32>
    %cst_23 = arith.constant 0.00999999977 : f32
    %34 = vector.broadcast %cst_23 : f32 to vector<16x128xf32>
    %35 = arith.mulf %34, %33 : vector<16x128xf32>
    %36 = arith.maximumf %33, %35 : vector<16x128xf32>
    %c0_24 = arith.constant 0 : index
    %c0_25 = arith.constant 0 : index
    %37 = vector.load %arg10[%c0_24, %c0_25] : memref<1x128xf32, #tpu.memory_space<vmem>>, vector<1x128xf32>
    %38 = vector.broadcast %37 : vector<1x128xf32> to vector<16x128xf32>
    %39 = arith.mulf %36, %38 : vector<16x128xf32>
    %cst_26 = arith.constant dense<0.000000e+00> : vector<16xf32>
    %40 = vector.multi_reduction <add>, %39, %cst_26 [1] : vector<16x128xf32> to vector<16xf32>
    %41 = vector.shape_cast %40 : vector<16xf32> to vector<16x1xf32>
    %c0_27 = arith.constant 0 : index
    %c0_28 = arith.constant 0 : index
    %42 = vector.load %arg11[%c0_27, %c0_28] : memref<1x1xf32, #tpu.memory_space<vmem>>, vector<1x1xf32>
    %43 = vector.broadcast %42 : vector<1x1xf32> to vector<16x1xf32>
    %44 = arith.addf %41, %43 : vector<16x1xf32>
    %c0_29 = arith.constant 0 : index
    %c0_30 = arith.constant 0 : index
    %45 = vector.load %arg12[%c0_29, %c0_30] : memref<16x1xf32, #tpu.memory_space<vmem>>, vector<16x1xf32>
    tpu.vector_store %arg12[%c0_29, %c0_30], %44 {strides = array<i32>} : memref<16x1xf32, #tpu.memory_space<vmem>>, vector<16x1xf32>,
    return
  }
  func.func @transform_0(%arg0: i32) -> (i32, i32) {
    %c0_i32 = arith.constant 0 : i32
    %c0_i32_0 = arith.constant 0 : i32
    return %arg0, %c0_i32 : i32, i32
  }
  func.func @transform_1(%arg0: i32) -> (i32, i32) {
    %c0_i32 = arith.constant 0 : i32
    %c0_i32_0 = arith.constant 0 : i32
    %c0_i32_1 = arith.constant 0 : i32
    return %c0_i32, %c0_i32_0 : i32, i32
  }
  func.func @transform_2(%arg0: i32) -> (i32, i32) {
    %c0_i32 = arith.constant 0 : i32
    %c0_i32_0 = arith.constant 0 : i32
    %c0_i32_1 = arith.constant 0 : i32
    return %c0_i32, %c0_i32_0 : i32, i32
  }
  func.func @transform_3(%arg0: i32) -> (i32, i32) {
    %c0_i32 = arith.constant 0 : i32
    %c0_i32_0 = arith.constant 0 : i32
    %c0_i32_1 = arith.constant 0 : i32
    return %c0_i32, %c0_i32_0 : i32, i32
  }
  func.func @transform_4(%arg0: i32) -> (i32, i32) {
    %c0_i32 = arith.constant 0 : i32
    %c0_i32_0 = arith.constant 0 : i32
    %c0_i32_1 = arith.constant 0 : i32
    return %c0_i32, %c0_i32_0 : i32, i32
  }
  func.func @transform_5(%arg0: i32) -> (i32, i32) {
    %c0_i32 = arith.constant 0 : i32
    %c0_i32_0 = arith.constant 0 : i32
    %c0_i32_1 = arith.constant 0 : i32
    return %c0_i32, %c0_i32_0 : i32, i32
  }
  func.func @transform_6(%arg0: i32) -> (i32, i32) {
    %c0_i32 = arith.constant 0 : i32
    %c0_i32_0 = arith.constant 0 : i32
    %c0_i32_1 = arith.constant 0 : i32
    return %c0_i32, %c0_i32_0 : i32, i32
  }
  func.func @transform_7(%arg0: i32) -> (i32, i32) {
    %c0_i32 = arith.constant 0 : i32
    %c0_i32_0 = arith.constant 0 : i32
    %c0_i32_1 = arith.constant 0 : i32
    return %c0_i32, %c0_i32_0 : i32, i32
  }
  func.func @transform_8(%arg0: i32) -> (i32, i32) {
    %c0_i32 = arith.constant 0 : i32
    %c0_i32_0 = arith.constant 0 : i32
    %c0_i32_1 = arith.constant 0 : i32
    return %c0_i32, %c0_i32_0 : i32, i32
  }
  func.func @transform_9(%arg0: i32) -> (i32, i32) {
    %c0_i32 = arith.constant 0 : i32
    %c0_i32_0 = arith.constant 0 : i32
    %c0_i32_1 = arith.constant 0 : i32
    return %c0_i32, %c0_i32_0 : i32, i32
  }
  func.func @transform_10(%arg0: i32) -> (i32, i32) {
    %c0_i32 = arith.constant 0 : i32
    %c0_i32_0 = arith.constant 0 : i32
    %c0_i32_1 = arith.constant 0 : i32
    return %c0_i32, %c0_i32_0 : i32, i32
  }
  func.func @transform_11(%arg0: i32) -> (i32, i32) {
    %c0_i32 = arith.constant 0 : i32
    %c0_i32_0 = arith.constant 0 : i32
    return %arg0, %c0_i32 : i32, i32
  }
}

</mosaic_0001>

<llo_original>
// kernel: ann_forward.1
$region0: #{ann_forward.1}
  #allocation0 [shape = 'u32[]', space=smem, size = 0x4, offset = 0x4, fixed_abs, tag = 'smem constant byte address 0x4 - core index']
  #allocation1 [shape = 'u32[72,128]{1,0:T(1,128)}', space=vmem, size = 0x9000, scoped, tag = 'internal scratch']
  #allocation2 [shape = 'f32[1,1]{1,0:T(1,128)S(1)}', space=vmem, size = 0x200, scoped, tag = 'scoped memory for ann_forward.1']
  %s0 = inlined_call_operand.hbm [shape: f32[16,360], index: 0, kind: input, shape index: {}]
  %s1 = inlined_call_operand.hbm [shape: bf16[360,128], index: 1, kind: input, shape index: {}]
  %s2 = inlined_call_operand.vmem [shape: f32[1,128], index: 2, kind: input, shape index: {}]
  %s3 = inlined_call_operand.hbm [shape: bf16[128,128], index: 3, kind: input, shape index: {}]
  %s4 = inlined_call_operand.vmem [shape: f32[1,128], index: 4, kind: input, shape index: {}]
  %s5 = inlined_call_operand.hbm [shape: bf16[128,128], index: 5, kind: input, shape index: {}]
  %s6 = inlined_call_operand.vmem [shape: f32[1,128], index: 6, kind: input, shape index: {}]
  %s7 = inlined_call_operand.hbm [shape: bf16[128,128], index: 7, kind: input, shape index: {}]
  %s8 = inlined_call_operand.vmem [shape: f32[1,128], index: 8, kind: input, shape index: {}]
  %s9 = inlined_call_operand.vmem [shape: f32[1,128], index: 9, kind: input, shape index: {}]
  %s10 = inlined_call_operand.<no memory space> [shape: f32[1,1], index: 10, kind: input, shape index: {}]
  %s11 = inlined_call_operand.vmem [shape: f32[16,1], index: 11, kind: output, shape index: {}]
  %s12 = sld [smem:[#allocation0]]
  $region74: #{ann_forward.1} parent=0
    _
  %s14 = ssub.s32 1, %s12
  %s15 = scalar_select 0, %s14, %s12
  %v16 = vstv %s10
  %17 = vst [vmem:[#allocation2] sm:$0x1] %v16
  $region1: #{ann_forward.1} parent=0
    #allocation3 [shape = 'u8[24576]{0}', space=vmem, size = 0x6000, scoped, tag = 'input window, operand 0, single buffered']
    #allocation4 [shape = 's32[1]{0}', space=sflag, size = 0x4, scoped, tag = 'scoped memory for ann_forward.1']
    #allocation5 [shape = 'u8[92160]{0}', space=vmem, size = 0x16800, scoped, tag = 'input window, operand 1, single buffered']
    #allocation6 [shape = 's32[1]{0}', space=sflag, size = 0x4, scoped, tag = 'scoped memory for ann_forward.1']
    #allocation7 [shape = 'u8[32768]{0}', space=vmem, size = 0x8000, scoped, tag = 'input window, operand 3, single buffered']
    #allocation8 [shape = 'u8[32768]{0}', space=vmem, size = 0x8000, scoped, tag = 'input window, operand 5, single buffered']
    #allocation9 [shape = 's32[1]{0}', space=sflag, size = 0x4, scoped, tag = 'scoped memory for ann_forward.1']
    #allocation10 [shape = 'u8[32768]{0}', space=vmem, size = 0x8000, scoped, tag = 'input window, operand 7, single buffered']
    %18 = vsyncpa [#allocation4], 0
    %19 = vsyncpa [#allocation6], 0
    %20 = vsyncpa [#allocation9], 0
    // Predicated region
    $region2: #{ann_forward.1} parent=1 // pred_check
      _
    $region3: #{ann_forward.1} parent=1 // pred_check_branch
      %22 = sbr.rel (0) target = $region5
    $region4: #{ann_forward.1} parent=1 // pred_region
      %24 = vsyncadd [#allocation4], 0
      %s25 = sshll.u32 %s0, 4
      %s26 = int_to_ptr.hbm [resolvable:$true] %s25
      %s27 = sshll.u32 [#allocation3], 4
      %s28 = int_to_ptr.vmem [resolvable:$true] %s27
      %33 = dma.hbm_to_vmem [thread:$0]  %s26, 768, %s28, [#allocation4], 384, 384, 24
    $region5: #{ann_forward.1} parent=1 // pred_fallthru
      _
    // Predicated region
    $region6: #{ann_forward.1} parent=1 // pred_check
      _
    $region7: #{ann_forward.1} parent=1 // pred_check_branch
      %35 = sbr.rel (0) target = $region9
    $region8: #{ann_forward.1} parent=1 // pred_region
      %37 = vsyncadd [#allocation6], 0
      %s38 = sshll.u32 %s1, 4
      %s39 = int_to_ptr.hbm [resolvable:$true] %s38
      %s40 = sshll.u32 [#allocation5], 4
      %s41 = int_to_ptr.vmem [resolvable:$true] %s40
      %46 = dma.hbm_to_vmem [thread:$0]  %s39, 2880, %s41, [#allocation6], 64, 64, 4
    $region9: #{ann_forward.1} parent=1 // pred_fallthru
      _
    // Predicated region
    $region10: #{ann_forward.1} parent=1 // pred_check
      _
    $region11: #{ann_forward.1} parent=1 // pred_check_branch
      %48 = sbr.rel (0) target = $region13
    $region12: #{ann_forward.1} parent=1 // pred_region
      _
    $region13: #{ann_forward.1} parent=1 // pred_fallthru
      _
    // Predicated region
    $region14: #{ann_forward.1} parent=1 // pred_check
      _
    $region15: #{ann_forward.1} parent=1 // pred_check_branch
      %50 = sbr.rel (0) target = $region17
    $region16: #{ann_forward.1} parent=1 // pred_region
      %52 = vsyncadd [#allocation6], 0
      %s53 = sshll.u32 %s3, 4
      %s54 = int_to_ptr.hbm [resolvable:$true] %s53
      %s55 = sshll.u32 [#allocation7], 4
      %s56 = int_to_ptr.vmem [resolvable:$true] %s55
      %61 = dma.hbm_to_vmem [thread:$0]  %s54, 1024, %s56, [#allocation6], 64, 64, 4
    $region17: #{ann_forward.1} parent=1 // pred_fallthru
      _
    // Predicated region
    $region18: #{ann_forward.1} parent=1 // pred_check
      _
    $region19: #{ann_forward.1} parent=1 // pred_check_branch
      %63 = sbr.rel (0) target = $region21
    $region20: #{ann_forward.1} parent=1 // pred_region
      _
    $region21: #{ann_forward.1} parent=1 // pred_fallthru
      _
    // Predicated region
    $region22: #{ann_forward.1} parent=1 // pred_check
      _
    $region23: #{ann_forward.1} parent=1 // pred_check_branch
      %65 = sbr.rel (0) target = $region25
    $region24: #{ann_forward.1} parent=1 // pred_region
      %67 = vsyncadd [#allocation9], 0
      %s68 = sshll.u32 %s5, 4
      %s69 = int_to_ptr.hbm [resolvable:$true] %s68
      %s70 = sshll.u32 [#allocation8], 4
      %s71 = int_to_ptr.vmem [resolvable:$true] %s70
      %76 = dma.hbm_to_vmem [thread:$0]  %s69, 1024, %s71, [#allocation9], 64, 64, 4
    $region25: #{ann_forward.1} parent=1 // pred_fallthru
      _
    // Predicated region
    $region26: #{ann_forward.1} parent=1 // pred_check
      _
    $region27: #{ann_forward.1} parent=1 // pred_check_branch
      %78 = sbr.rel (0) target = $region29
    $region28: #{ann_forward.1} parent=1 // pred_region
      _
    $region29: #{ann_forward.1} parent=1 // pred_fallthru
      _
    // Predicated region
    $region30: #{ann_forward.1} parent=1 // pred_check
      _
    $region31: #{ann_forward.1} parent=1 // pred_check_branch
      %80 = sbr.rel (0) target = $region33
    $region32: #{ann_forward.1} parent=1 // pred_region
      %82 = vsyncadd [#allocation9], 0
      %s83 = sshll.u32 %s7, 4
      %s84 = int_to_ptr.hbm [resolvable:$true] %s83
      %s85 = sshll.u32 [#allocation10], 4
      %s86 = int_to_ptr.vmem [resolvable:$true] %s85
      %91 = dma.hbm_to_vmem [thread:$0]  %s84, 1024, %s86, [#allocation9], 64, 64, 4
    $region33: #{ann_forward.1} parent=1 // pred_fallthru
      _
    // Predicated region
    $region34: #{ann_forward.1} parent=1 // pred_check
      _
    $region35: #{ann_forward.1} parent=1 // pred_check_branch
      %93 = sbr.rel (0) target = $region37
    $region36: #{ann_forward.1} parent=1 // pred_region
      _
    $region37: #{ann_forward.1} parent=1 // pred_fallthru
      _
    // Predicated region
    $region38: #{ann_forward.1} parent=1 // pred_check
      _
    $region39: #{ann_forward.1} parent=1 // pred_check_branch
      %95 = sbr.rel (0) target = $region41
    $region40: #{ann_forward.1} parent=1 // pred_region
      _
    $region41: #{ann_forward.1} parent=1 // pred_fallthru
      _
    // Predicated region
    $region42: #{ann_forward.1} parent=1 // pred_check
      _
    $region43: #{ann_forward.1} parent=1 // pred_check_branch
      %97 = sbr.rel (0) target = $region45
    $region44: #{ann_forward.1} parent=1 // pred_region
      _
    $region45: #{ann_forward.1} parent=1 // pred_fallthru
      _
    // Predicated region
    $region46: #{ann_forward.1} parent=1 // pred_check
      _
    $region47: #{ann_forward.1} parent=1 // pred_check_branch
      %99 = sbr.rel (0) target = $region49
    $region48: #{ann_forward.1} parent=1 // pred_region
      %101 = dma.done [#allocation4], 768
    $region49: #{ann_forward.1} parent=1 // pred_fallthru
      _
    // Predicated region
    $region50: #{ann_forward.1} parent=1 // pred_check
      _
    $region51: #{ann_forward.1} parent=1 // pred_check_branch
      %103 = sbr.rel (0) target = $region53
    $region52: #{ann_forward.1} parent=1 // pred_region
      %105 = dma.done [#allocation6], 2880
    $region53: #{ann_forward.1} parent=1 // pred_fallthru
      _
    // Predicated region
    $region54: #{ann_forward.1} parent=1 // pred_check
      _
    $region55: #{ann_forward.1} parent=1 // pred_check_branch
      %107 = sbr.rel (0) target = $region57
    $region56: #{ann_forward.1} parent=1 // pred_region
      %109 = dma.done [#allocation6], 1024
    $region57: #{ann_forward.1} parent=1 // pred_fallthru
      _
    // Predicated region
    $region58: #{ann_forward.1} parent=1 // pred_check
      _
    $region59: #{ann_forward.1} parent=1 // pred_check_branch
      %111 = sbr.rel (0) target = $region61
    $region60: #{ann_forward.1} parent=1 // pred_region
      %113 = dma.done [#allocation9], 1024
    $region61: #{ann_forward.1} parent=1 // pred_fallthru
      _
    // Predicated region
    $region62: #{ann_forward.1} parent=1 // pred_check
      _
    $region63: #{ann_forward.1} parent=1 // pred_check_branch
      %115 = sbr.rel (0) target = $region65
    $region64: #{ann_forward.1} parent=1 // pred_region
      %117 = dma.done [#allocation9], 1024
    $region65: #{ann_forward.1} parent=1 // pred_fallthru
      _
    %v119 = vld [vmem:[#allocation3] sm:$0xff]
    %v120 = vld [vmem:[#allocation3 + $0x8] sm:$0xff]
    %v121 = vld [vmem:[#allocation3 + $0x10] sm:$0xff]
    %v122 = vld [vmem:[#allocation3 + $0x18] sm:$0xff]
    %v123 = vld [vmem:[#allocation3 + $0x20] sm:$0xff]
    %v124 = vld [vmem:[#allocation3 + $0x28] sm:$0xff]
    %v125 = vpack.c.bf16 %v122, %v119
    %v126 = vpack.c.bf16 %v123, %v120
    %v127 = vpack.c.bf16 %v124, %v121
    %v128 = vld [vmem:[#allocation5] sm:$0xf]
    %v129 = vld [vmem:[#allocation5 + $0x4] sm:$0xf]
    %v130 = vld [vmem:[#allocation5 + $0x8] sm:$0xf]
    %v131 = vld [vmem:[#allocation5 + $0xc] sm:$0xf]
    %v132 = vld [vmem:[#allocation5 + $0x10] sm:$0xf]
    %v133 = vld [vmem:[#allocation5 + $0x14] sm:$0xf]
    %v134 = vld [vmem:[#allocation5 + $0x18] sm:$0xf]
    %v135 = vld [vmem:[#allocation5 + $0x1c] sm:$0xf]
    %v136 = vld [vmem:[#allocation5 + $0x20] sm:$0xf]
    %v137 = vld [vmem:[#allocation5 + $0x24] sm:$0xf]
    %v138 = vld [vmem:[#allocation5 + $0x28] sm:$0xf]
    %v139 = vld [vmem:[#allocation5 + $0x2c] sm:$0xf]
    %v140 = vld [vmem:[#allocation5 + $0x30] sm:$0xf]
    %v141 = vld [vmem:[#allocation5 + $0x34] sm:$0xf]
    %v142 = vld [vmem:[#allocation5 + $0x38] sm:$0xf]
    %v143 = vld [vmem:[#allocation5 + $0x3c] sm:$0xf]
    %v144 = vld [vmem:[#allocation5 + $0x40] sm:$0xf]
    %v145 = vld [vmem:[#allocation5 + $0x44] sm:$0xf]
    %v146 = vld [vmem:[#allocation5 + $0x48] sm:$0xf]
    %v147 = vld [vmem:[#allocation5 + $0x4c] sm:$0xf]
    %v148 = vld [vmem:[#allocation5 + $0x50] sm:$0xf]
    %v149 = vld [vmem:[#allocation5 + $0x54] sm:$0xf]
    %v150 = vld [vmem:[#allocation5 + $0x58] sm:$0xf]
    %v151 = vld [vmem:[#allocation5 + $0x5c] sm:$0xf]
    %v152 = vld [vmem:[#allocation5 + $0x60] sm:$0xf]
    %v153 = vld [vmem:[#allocation5 + $0x64] sm:$0xf]
    %v154 = vld [vmem:[#allocation5 + $0x68] sm:$0xf]
    %v155 = vld [vmem:[#allocation5 + $0x6c] sm:$0xf]
    %v156 = vld [vmem:[#allocation5 + $0x70] sm:$0xf]
    %v157 = vld [vmem:[#allocation5 + $0x74] sm:$0xf]
    %v158 = vld [vmem:[#allocation5 + $0x78] sm:$0xf]
    %v159 = vld [vmem:[#allocation5 + $0x7c] sm:$0xf]
    %v160 = vld [vmem:[#allocation5 + $0x80] sm:$0xf]
    %v161 = vld [vmem:[#allocation5 + $0x84] sm:$0xf]
    %v162 = vld [vmem:[#allocation5 + $0x88] sm:$0xf]
    %v163 = vld [vmem:[#allocation5 + $0x8c] sm:$0xf]
    %v164 = vld [vmem:[#allocation5 + $0x90] sm:$0xf]
    %v165 = vld [vmem:[#allocation5 + $0x94] sm:$0xf]
    %v166 = vld [vmem:[#allocation5 + $0x98] sm:$0xf]
    %v167 = vld [vmem:[#allocation5 + $0x9c] sm:$0xf]
    %v168 = vld [vmem:[#allocation5 + $0xa0] sm:$0xf]
    %v169 = vld [vmem:[#allocation5 + $0xa4] sm:$0xf]
    %v170 = vld [vmem:[#allocation5 + $0xa8] sm:$0xf]
    %v171 = vld [vmem:[#allocation5 + $0xac] sm:$0xf]
    %v172 = vld [vmem:[#allocation5 + $0xb0] sm:$0xf]
    %v173 = vld [vmem:[%s2] sm:$0x1]
    %v175 = vperm.slane %v173, 0
    %v222 = vunpack.c.l.b16 %v128
    %v223 = vunpack.c.l.b16 %v129
    %v224 = vunpack.c.l.b16 %v130
    %v225 = vunpack.c.l.b16 %v131
    %v226 = vunpack.c.l.b16 %v132
    %v227 = vunpack.c.l.b16 %v133
    %v228 = vunpack.c.l.b16 %v134
    %v229 = vunpack.c.l.b16 %v135
    %v230 = vunpack.c.l.b16 %v136
    %v231 = vunpack.c.l.b16 %v137
    %v232 = vunpack.c.l.b16 %v138
    %v233 = vunpack.c.l.b16 %v139
    %v234 = vunpack.c.l.b16 %v140
    %v235 = vunpack.c.l.b16 %v141
    %v236 = vunpack.c.l.b16 %v142
    %v237 = vunpack.c.l.b16 %v143
    %v238 = vunpack.c.l.b16 %v144
    %v239 = vunpack.c.l.b16 %v145
    %v240 = vunpack.c.l.b16 %v146
    %v241 = vunpack.c.l.b16 %v147
    %v242 = vunpack.c.l.b16 %v148
    %v243 = vunpack.c.l.b16 %v149
    %v244 = vunpack.c.l.b16 %v150
    %v245 = vunpack.c.l.b16 %v151
    %v246 = vunpack.c.l.b16 %v152
    %v247 = vunpack.c.l.b16 %v153
    %v248 = vunpack.c.l.b16 %v154
    %v249 = vunpack.c.l.b16 %v155
    %v250 = vunpack.c.l.b16 %v156
    %v251 = vunpack.c.l.b16 %v157
    %v252 = vunpack.c.l.b16 %v158
    %v253 = vunpack.c.l.b16 %v159
    %v254 = vunpack.c.l.b16 %v160
    %v255 = vunpack.c.l.b16 %v161
    %v256 = vunpack.c.l.b16 %v162
    %v257 = vunpack.c.l.b16 %v163
    %v258 = vunpack.c.l.b16 %v164
    %v259 = vunpack.c.l.b16 %v165
    %v260 = vunpack.c.l.b16 %v166
    %v261 = vunpack.c.l.b16 %v167
    %v262 = vunpack.c.l.b16 %v168
    %v263 = vunpack.c.l.b16 %v169
    %v264 = vunpack.c.l.b16 %v170
    %v265 = vunpack.c.l.b16 %v171
    %v266 = vunpack.c.l.b16 %v172
    %v267 = vpack.c.b16 %v223, %v222
    %v268 = vpack.c.b16 %v225, %v224
    %v269 = vpack.c.b16 %v227, %v226
    %v270 = vpack.c.b16 %v229, %v228
    %v271 = vpack.c.b16 %v231, %v230
    %v272 = vpack.c.b16 %v233, %v232
    %v273 = vpack.c.b16 %v235, %v234
    %v274 = vpack.c.b16 %v237, %v236
    %v275 = vpack.c.b16 %v239, %v238
    %v276 = vpack.c.b16 %v241, %v240
    %v277 = vpack.c.b16 %v243, %v242
    %v278 = vpack.c.b16 %v245, %v244
    %v279 = vpack.c.b16 %v247, %v246
    %v280 = vpack.c.b16 %v249, %v248
    %v281 = vpack.c.b16 %v251, %v250
    %v282 = vpack.c.b16 %v253, %v252
    %v283 = vpack.c.b16 %v255, %v254
    %v284 = vpack.c.b16 %v257, %v256
    %v285 = vpack.c.b16 %v259, %v258
    %v286 = vpack.c.b16 %v261, %v260
    %v287 = vpack.c.b16 %v263, %v262
    %v288 = vpack.c.b16 %v265, %v264
    %v289 = vpack.c.b16 %v266, %v266
    %vm312 = vcmask 850944
    %v314 = vsel %vm312, %v127, 0
    %vm316 = vcmask 1043456
    %v318 = vsel %vm316, %v289, 0
    %320 = vmatpush.bf16.msra.mxu0 %v274
    %321 = vmatpush.bf16.msra.mxu0 %v273
    %322 = vmatpush.bf16.msra.mxu0 %v272
    %323 = vmatpush.bf16.msra.mxu0 %v271
    %324 = vmatpush.bf16.msra.mxu0 %v270
    %325 = vmatpush.bf16.msra.mxu0 %v269
    %326 = vmatpush.bf16.msra.mxu0 %v268
    %327 = vmatpush.bf16.msra.mxu0 %v267
    %328 = vmatmul.bf16.gmra.mxu0 %v125
    %v329 = vpop.f32.mrf.mxu0
    %v330 = vadd.f32 %v175, %v329
    %v331 = vpop.f32.mrf.mxu0
    %v332 = vadd.f32 %v175, %v331
    %333 = vdwg.mxu0
    %334 = vmatpush.bf16.msra.mxu0 %v282
    %335 = vmatpush.bf16.msra.mxu0 %v281
    %336 = vmatpush.bf16.msra.mxu0 %v280
    %337 = vmatpush.bf16.msra.mxu0 %v279
    %338 = vmatpush.bf16.msra.mxu0 %v278
    %339 = vmatpush.bf16.msra.mxu0 %v277
    %340 = vmatpush.bf16.msra.mxu0 %v276
    %341 = vmatpush.bf16.msra.mxu0 %v275
    %342 = vmatmul.bf16.gmra.mxu0 %v126
    %v343 = vpop.f32.mrf.mxu0
    %v344 = vadd.f32 %v330, %v343
    %v345 = vpop.f32.mrf.mxu0
    %v346 = vadd.f32 %v332, %v345
    %347 = vdwg.mxu0
    %348 = vmatpush.bf16.msra.mxu0 0
    %349 = vmatpush.bf16.msra.mxu0 %v318
    %350 = vmatpush.bf16.msra.mxu0 %v288
    %351 = vmatpush.bf16.msra.mxu0 %v287
    %352 = vmatpush.bf16.msra.mxu0 %v286
    %353 = vmatpush.bf16.msra.mxu0 %v285
    %354 = vmatpush.bf16.msra.mxu0 %v284
    %355 = vmatpush.bf16.msra.mxu0 %v283
    %356 = vmatmul.bf16.gmra.mxu0 %v314
    %v357 = vpop.f32.mrf.mxu0
    %v358 = vadd.f32 %v344, %v357
    %v359 = vpop.f32.mrf.mxu0
    %v360 = vadd.f32 %v346, %v359
    %361 = vdwg.mxu0
    %v362 = vmul.f32 %v358, 0.01
    %v363 = vmul.f32 %v360, 0.01
    %v364 = vmax.f32 %v358, %v362
    %v365 = vmax.f32 %v360, %v363
    %v366 = vpack.c.bf16 %v365, %v364
    %v367 = vld [vmem:[#allocation7] sm:$0xf]
    %v368 = vld [vmem:[#allocation7 + $0x4] sm:$0xf]
    %v369 = vld [vmem:[#allocation7 + $0x8] sm:$0xf]
    %v370 = vld [vmem:[#allocation7 + $0xc] sm:$0xf]
    %v371 = vld [vmem:[#allocation7 + $0x10] sm:$0xf]
    %v372 = vld [vmem:[#allocation7 + $0x14] sm:$0xf]
    %v373 = vld [vmem:[#allocation7 + $0x18] sm:$0xf]
    %v374 = vld [vmem:[#allocation7 + $0x1c] sm:$0xf]
    %v375 = vld [vmem:[#allocation7 + $0x20] sm:$0xf]
    %v376 = vld [vmem:[#allocation7 + $0x24] sm:$0xf]
    %v377 = vld [vmem:[#allocation7 + $0x28] sm:$0xf]
    %v378 = vld [vmem:[#allocation7 + $0x2c] sm:$0xf]
    %v379 = vld [vmem:[#allocation7 + $0x30] sm:$0xf]
    %v380 = vld [vmem:[#allocation7 + $0x34] sm:$0xf]
    %v381 = vld [vmem:[#allocation7 + $0x38] sm:$0xf]
    %v382 = vld [vmem:[#allocation7 + $0x3c] sm:$0xf]
    %v383 = vld [vmem:[%s4] sm:$0x1]
    %v385 = vperm.slane %v383, 0
    %v403 = vunpack.c.l.b16 %v367
    %v404 = vunpack.c.l.b16 %v368
    %v405 = vunpack.c.l.b16 %v369
    %v406 = vunpack.c.l.b16 %v370
    %v407 = vunpack.c.l.b16 %v371
    %v408 = vunpack.c.l.b16 %v372
    %v409 = vunpack.c.l.b16 %v373
    %v410 = vunpack.c.l.b16 %v374
    %v411 = vunpack.c.l.b16 %v375
    %v412 = vunpack.c.l.b16 %v376
    %v413 = vunpack.c.l.b16 %v377
    %v414 = vunpack.c.l.b16 %v378
    %v415 = vunpack.c.l.b16 %v379
    %v416 = vunpack.c.l.b16 %v380
    %v417 = vunpack.c.l.b16 %v381
    %v418 = vunpack.c.l.b16 %v382
    %v419 = vpack.c.b16 %v404, %v403
    %v420 = vpack.c.b16 %v406, %v405
    %v421 = vpack.c.b16 %v408, %v407
    %v422 = vpack.c.b16 %v410, %v409
    %v423 = vpack.c.b16 %v412, %v411
    %v424 = vpack.c.b16 %v414, %v413
    %v425 = vpack.c.b16 %v416, %v415
    %v426 = vpack.c.b16 %v418, %v417
    %435 = vmatpush.bf16.msra.mxu0 %v426
    %436 = vmatpush.bf16.msra.mxu0 %v425
    %437 = vmatpush.bf16.msra.mxu0 %v424
    %438 = vmatpush.bf16.msra.mxu0 %v423
    %439 = vmatpush.bf16.msra.mxu0 %v422
    %440 = vmatpush.bf16.msra.mxu0 %v421
    %441 = vmatpush.bf16.msra.mxu0 %v420
    %442 = vmatpush.bf16.msra.mxu0 %v419
    %443 = vmatmul.bf16.gmra.mxu0 %v366
    %v444 = vpop.f32.mrf.mxu0
    %v445 = vadd.f32 %v385, %v444
    %v446 = vpop.f32.mrf.mxu0
    %v447 = vadd.f32 %v385, %v446
    %448 = vdwg.mxu0
    %v449 = vmul.f32 %v445, 0.01
    %v450 = vmul.f32 %v447, 0.01
    %v451 = vmax.f32 %v445, %v449
    %v452 = vmax.f32 %v447, %v450
    %v453 = vpack.c.bf16 %v452, %v451
    %v454 = vld [vmem:[#allocation8] sm:$0xf]
    %v455 = vld [vmem:[#allocation8 + $0x4] sm:$0xf]
    %v456 = vld [vmem:[#allocation8 + $0x8] sm:$0xf]
    %v457 = vld [vmem:[#allocation8 + $0xc] sm:$0xf]
    %v458 = vld [vmem:[#allocation8 + $0x10] sm:$0xf]
    %v459 = vld [vmem:[#allocation8 + $0x14] sm:$0xf]
    %v460 = vld [vmem:[#allocation8 + $0x18] sm:$0xf]
    %v461 = vld [vmem:[#allocation8 + $0x1c] sm:$0xf]
    %v462 = vld [vmem:[#allocation8 + $0x20] sm:$0xf]
    %v463 = vld [vmem:[#allocation8 + $0x24] sm:$0xf]
    %v464 = vld [vmem:[#allocation8 + $0x28] sm:$0xf]
    %v465 = vld [vmem:[#allocation8 + $0x2c] sm:$0xf]
    %v466 = vld [vmem:[#allocation8 + $0x30] sm:$0xf]
    %v467 = vld [vmem:[#allocation8 + $0x34] sm:$0xf]
    %v468 = vld [vmem:[#allocation8 + $0x38] sm:$0xf]
    %v469 = vld [vmem:[#allocation8 + $0x3c] sm:$0xf]
    %v470 = vld [vmem:[%s6] sm:$0x1]
    %v472 = vperm.slane %v470, 0
    %v490 = vunpack.c.l.b16 %v454
    %v491 = vunpack.c.l.b16 %v455
    %v492 = vunpack.c.l.b16 %v456
    %v493 = vunpack.c.l.b16 %v457
    %v494 = vunpack.c.l.b16 %v458
    %v495 = vunpack.c.l.b16 %v459
    %v496 = vunpack.c.l.b16 %v460
    %v497 = vunpack.c.l.b16 %v461
    %v498 = vunpack.c.l.b16 %v462
    %v499 = vunpack.c.l.b16 %v463
    %v500 = vunpack.c.l.b16 %v464
    %v501 = vunpack.c.l.b16 %v465
    %v502 = vunpack.c.l.b16 %v466
    %v503 = vunpack.c.l.b16 %v467
    %v504 = vunpack.c.l.b16 %v468
    %v505 = vunpack.c.l.b16 %v469
    %v506 = vpack.c.b16 %v491, %v490
    %v507 = vpack.c.b16 %v493, %v492
    %v508 = vpack.c.b16 %v495, %v494
    %v509 = vpack.c.b16 %v497, %v496
    %v510 = vpack.c.b16 %v499, %v498
    %v511 = vpack.c.b16 %v501, %v500
    %v512 = vpack.c.b16 %v503, %v502
    %v513 = vpack.c.b16 %v505, %v504
    %522 = vmatpush.bf16.msra.mxu0 %v513
    %523 = vmatpush.bf16.msra.mxu0 %v512
    %524 = vmatpush.bf16.msra.mxu0 %v511
    %525 = vmatpush.bf16.msra.mxu0 %v510
    %526 = vmatpush.bf16.msra.mxu0 %v509
    %527 = vmatpush.bf16.msra.mxu0 %v508
    %528 = vmatpush.bf16.msra.mxu0 %v507
    %529 = vmatpush.bf16.msra.mxu0 %v506
    %530 = vmatmul.bf16.gmra.mxu0 %v453
    %v531 = vpop.f32.mrf.mxu0
    %v532 = vadd.f32 %v472, %v531
    %v533 = vpop.f32.mrf.mxu0
    %v534 = vadd.f32 %v472, %v533
    %535 = vdwg.mxu0
    %v536 = vmul.f32 %v532, 0.01
    %v537 = vmul.f32 %v534, 0.01
    %v538 = vmax.f32 %v532, %v536
    %v539 = vmax.f32 %v534, %v537
    %v540 = vpack.c.bf16 %v539, %v538
    %v541 = vld [vmem:[#allocation10] sm:$0xf]
    %v542 = vld [vmem:[#allocation10 + $0x4] sm:$0xf]
    %v543 = vld [vmem:[#allocation10 + $0x8] sm:$0xf]
    %v544 = vld [vmem:[#allocation10 + $0xc] sm:$0xf]
    %v545 = vld [vmem:[#allocation10 + $0x10] sm:$0xf]
    %v546 = vld [vmem:[#allocation10 + $0x14] sm:$0xf]
    %v547 = vld [vmem:[#allocation10 + $0x18] sm:$0xf]
    %v548 = vld [vmem:[#allocation10 + $0x1c] sm:$0xf]
    %v549 = vld [vmem:[#allocation10 + $0x20] sm:$0xf]
    %v550 = vld [vmem:[#allocation10 + $0x24] sm:$0xf]
    %v551 = vld [vmem:[#allocation10 + $0x28] sm:$0xf]
    %v552 = vld [vmem:[#allocation10 + $0x2c] sm:$0xf]
    %v553 = vld [vmem:[#allocation10 + $0x30] sm:$0xf]
    %v554 = vld [vmem:[#allocation10 + $0x34] sm:$0xf]
    %v555 = vld [vmem:[#allocation10 + $0x38] sm:$0xf]
    %v556 = vld [vmem:[#allocation10 + $0x3c] sm:$0xf]
    %v557 = vld [vmem:[%s8] sm:$0x1]
    %v559 = vperm.slane %v557, 0
    %v577 = vunpack.c.l.b16 %v541
    %v578 = vunpack.c.l.b16 %v542
    %v579 = vunpack.c.l.b16 %v543
    %v580 = vunpack.c.l.b16 %v544
    %v581 = vunpack.c.l.b16 %v545
    %v582 = vunpack.c.l.b16 %v546
    %v583 = vunpack.c.l.b16 %v547
    %v584 = vunpack.c.l.b16 %v548
    %v585 = vunpack.c.l.b16 %v549
    %v586 = vunpack.c.l.b16 %v550
    %v587 = vunpack.c.l.b16 %v551
    %v588 = vunpack.c.l.b16 %v552
    %v589 = vunpack.c.l.b16 %v553
    %v590 = vunpack.c.l.b16 %v554
    %v591 = vunpack.c.l.b16 %v555
    %v592 = vunpack.c.l.b16 %v556
    %v593 = vpack.c.b16 %v578, %v577
    %v594 = vpack.c.b16 %v580, %v579
    %v595 = vpack.c.b16 %v582, %v581
    %v596 = vpack.c.b16 %v584, %v583
    %v597 = vpack.c.b16 %v586, %v585
    %v598 = vpack.c.b16 %v588, %v587
    %v599 = vpack.c.b16 %v590, %v589
    %v600 = vpack.c.b16 %v592, %v591
    %609 = vmatpush.bf16.msra.mxu0 %v600
    %610 = vmatpush.bf16.msra.mxu0 %v599
    %611 = vmatpush.bf16.msra.mxu0 %v598
    %612 = vmatpush.bf16.msra.mxu0 %v597
    %613 = vmatpush.bf16.msra.mxu0 %v596
    %614 = vmatpush.bf16.msra.mxu0 %v595
    %615 = vmatpush.bf16.msra.mxu0 %v594
    %616 = vmatpush.bf16.msra.mxu0 %v593
    %617 = vmatmul.bf16.gmra.mxu0 %v540
    %v618 = vpop.f32.mrf.mxu0
    %v619 = vadd.f32 %v559, %v618
    %v620 = vpop.f32.mrf.mxu0
    %v621 = vadd.f32 %v559, %v620
    %622 = vdwg.mxu0
    %v623 = vmul.f32 %v619, 0.01
    %v624 = vmul.f32 %v621, 0.01
    %v625 = vmax.f32 %v619, %v623
    %v626 = vmax.f32 %v621, %v624
    %v627 = vld [vmem:[%s9] sm:$0x1]
    %v629 = vperm.slane %v627, 0
    %v631 = vmul.f32 %v625, %v629
    %v632 = vmul.f32 %v626, %v629
    %633 = vadd.xlane.f32.xlu0 %v631
    %v634 = vpop.xlane.xlu0 %633
    %635 = vadd.xlane.f32.xlu0 %v632
    %v636 = vpop.xlane.xlu0 %635
    %v637 = vld [vmem:[#allocation2] sm:$0x1]
    %v639 = vperm.slane %v637, 0
    %v641 = vadd.f32 %v634, %v639
    %v642 = vadd.f32 %v636, %v639
    %vm643 = vcmask 7168
    %644 = vst.msk [vmem:[%s11] sm:$0xff] %vm643, %v641
    %645 = vst.msk [vmem:[%s11 + $0x8] sm:$0xff] %vm643, %v642
    // Predicated region
    $region66: #{ann_forward.1} parent=1 // pred_check
      _
    $region67: #{ann_forward.1} parent=1 // pred_check_branch
      %647 = sbr.rel (0) target = $region69
    $region68: #{ann_forward.1} parent=1 // pred_region
      _
    $region69: #{ann_forward.1} parent=1 // pred_fallthru
      _
    // Predicated region
    $region70: #{ann_forward.1} parent=1 // pred_check
      _
    $region71: #{ann_forward.1} parent=1 // pred_check_branch
      %649 = sbr.rel (0) target = $region73
    $region72: #{ann_forward.1} parent=1 // pred_region
      _
    $region73: #{ann_forward.1} parent=1 // pred_fallthru
      _
    %650 = vsyncpa [#allocation4], 1
    %651 = vsyncpa [#allocation6], 1
    %652 = vsyncpa [#allocation9], 1

</llo_original>
